<compile_context>
chip_gen: v6e
topology: v6e:2x2x1
jax: 0.10.0
libtpu: 0.0.40
codegen_flags: <defaults>
</compile_context>

<pallas_src>
import functools

import jax
import jax.numpy as jnp
from jax import lax
from jax.experimental import pallas as pl
from jax.experimental.pallas import tpu as pltpu


def _ce_label_smooth_kernel(x_ref, t_ref, partial_ref, *,
                            num_classes, epsilon, batch, tile_rows):
    # x_ref: (TB, Kpad) logits tile in VMEM; t_ref: (TB, 1) int32 labels tile in VMEM;
    # partial_ref: (1, 8, 128) f32 per-tile partial-sum block (only [0,0,0] non-zero).
    i = pl.program_id(0)

    x = x_ref[...].astype(jnp.float32)                          # (TB, Kpad)
    tb, k_pad = x.shape

    class_ids = lax.broadcasted_iota(jnp.int32, (tb, k_pad), 1)
    valid_class = class_ids < num_classes                       # mask padded class lanes

    neg_big = jnp.float32(-1e30)
    xm = jnp.where(valid_class, x, neg_big)
    x_max = jnp.max(xm, axis=-1, keepdims=True)                 # (TB, 1)
    shifted = xm - x_max                                        # padded lanes ~ -1e30
    lse = jnp.log(jnp.sum(jnp.exp(shifted), axis=-1, keepdims=True))  # (TB, 1)

    t = t_ref[...]                                              # (TB, 1) int32
    shifted_t = jnp.sum(jnp.where(class_ids == t, shifted, 0.0),
                        axis=-1, keepdims=True)                 # (TB, 1)
    sum_shifted = jnp.sum(jnp.where(valid_class, shifted, 0.0),
                          axis=-1, keepdims=True)               # (TB, 1)

    # (1-eps)*(lse - shifted_t) + (eps/K)*(K*lse - sum_shifted)
    #   == lse - (1-eps)*shifted_t - (eps/K)*sum_shifted
    row_loss = (lse
                - (1.0 - epsilon) * shifted_t
                - (epsilon / num_classes) * sum_shifted)        # (TB, 1)

    # mask padded batch rows out of the reduction
    row_ids = i * tile_rows + lax.broadcasted_iota(jnp.int32, (tb, 1), 0)
    row_loss = jnp.where(row_ids < batch, row_loss, 0.0)

    partial = jnp.sum(row_loss)                                 # scalar f32
    sub = lax.broadcasted_iota(jnp.int32, (1, 8, 128), 1)
    lane = lax.broadcasted_iota(jnp.int32, (1, 8, 128), 2)
    partial_ref[...] = jnp.where((sub == 0) & (lane == 0), partial, 0.0)


def _choose_tile_rows(batch, k_pad, itemsize, budget_bytes=24 * 1024 * 1024):
    # Double-buffered logits tiles dominate VMEM use: 2 * TB * Kpad * itemsize.
    max_rows = max(8, budget_bytes // (2 * k_pad * itemsize))
    b_rounded = ((batch + 7) // 8) * 8
    tb = min(512, max_rows, b_rounded)
    tb = max(8, (tb // 8) * 8)
    return tb


def cross_entropy_label_smooth(inputs, targets, *, num_classes=None, epsilon=0.1,
                               tile_rows=None):
    """inputs: (B, num_classes) float logits (f32 or bf16); targets: (B,) int class indices."""
    B, K = inputs.shape
    if num_classes is None:
        num_classes = K
    assert K == num_classes

    k_pad = ((K + 127) // 128) * 128
    itemsize = jnp.dtype(inputs.dtype).itemsize
    tb = tile_rows if tile_rows is not None else _choose_tile_rows(B, k_pad, itemsize)
    assert tb % 8 == 0
    b_pad = ((B + tb - 1) // tb) * tb
    num_tiles = b_pad // tb

    x = inputs
    if (b_pad != B) or (k_pad != K):
        x = jnp.pad(x, ((0, b_pad - B), (0, k_pad - K)))
    t = targets.astype(jnp.int32).reshape(B, 1)
    if b_pad != B:
        t = jnp.pad(t, ((0, b_pad - B), (0, 0)))

    kernel = functools.partial(
        _ce_label_smooth_kernel,
        num_classes=num_classes, epsilon=float(epsilon), batch=B, tile_rows=tb,
    )

    partials = pl.pallas_call(
        kernel,
        out_shape=jax.ShapeDtypeStruct((num_tiles, 8, 128), jnp.float32),
        grid_spec=pltpu.PrefetchScalarGridSpec(
            num_scalar_prefetch=0,
            grid=(num_tiles,),
            in_specs=[
                pl.BlockSpec((tb, k_pad), lambda i: (i, 0)),       # logits tile
                pl.BlockSpec((tb, 1), lambda i: (i, 0)),           # labels tile
            ],
            out_specs=pl.BlockSpec((1, 8, 128), lambda i: (i, 0, 0)),  # per-tile partial
        ),
        compiler_params=pltpu.CompilerParams(
            dimension_semantics=("parallel",),   # independent per-tile partials (megacore-friendly)
            vmem_limit_bytes=48 * 1024 * 1024,
        ),
    )(x, t)
    # Tiny final reduction in plain JAX (only [:, 0, 0] is non-zero).
    return jnp.sum(partials) / jnp.float32(B)


def _reference(inputs, targets, num_classes=31, epsilon=0.1):
    log_probs = jax.nn.log_softmax(inputs.astype(jnp.float32), axis=1)
    one_hot = jax.nn.one_hot(targets, num_classes, dtype=jnp.float32)
    smoothed = (1.0 - epsilon) * one_hot + epsilon / num_classes
    return (-smoothed * log_probs).mean(0).sum()


if __name__ == "__main__":
    num_classes = 31
    epsilon = 0.1
    batch = 8

    key = jax.random.PRNGKey(0)
    k_x, k_t = jax.random.split(key)
    inputs = jax.random.normal(k_x, (batch, num_classes), dtype=jnp.float32)
    targets = jax.random.randint(k_t, (batch,), 0, num_classes, dtype=jnp.int32)

    loss = cross_entropy_label_smooth(inputs, targets,
                                      num_classes=num_classes, epsilon=epsilon)
    loss = jax.block_until_ready(loss)
    ref = _reference(inputs, targets, num_classes, epsilon)
    assert jnp.allclose(loss, ref, atol=1e-5, rtol=1e-5), (loss, ref)

    # padded-batch path (batch not a multiple of 8) within a single tile
    k_x2, k_t2 = jax.random.split(k_t)
    inputs2 = jax.random.normal(k_x2, (37, num_classes), dtype=jnp.float32)
    targets2 = jax.random.randint(k_t2, (37,), 0, num_classes, dtype=jnp.int32)
    loss2 = jax.block_until_ready(
        cross_entropy_label_smooth(inputs2, targets2,
                                   num_classes=num_classes, epsilon=epsilon))
    ref2 = _reference(inputs2, targets2, num_classes, epsilon)
    assert jnp.allclose(loss2, ref2, atol=1e-5, rtol=1e-5), (loss2, ref2)

    # multi-tile path (forced small tile) with padded last tile, exercising the
    # parallel per-tile partial sums
    k_x3, k_t3 = jax.random.split(k_t2)
    inputs3 = jax.random.normal(k_x3, (300, num_classes), dtype=jnp.float32)
    targets3 = jax.random.randint(k_t3, (300,), 0, num_classes, dtype=jnp.int32)
    loss3 = jax.block_until_ready(
        cross_entropy_label_smooth(inputs3, targets3,
                                   num_classes=num_classes, epsilon=epsilon,
                                   tile_rows=128))
    ref3 = _reference(inputs3, targets3, num_classes, epsilon)
    assert jnp.allclose(loss3, ref3, atol=1e-5, rtol=1e-5), (loss3, ref3)

    # bf16 logits path (kernel upcasts to f32 internally)
    inputs4 = inputs3.astype(jnp.bfloat16)
    loss4 = jax.block_until_ready(
        cross_entropy_label_smooth(inputs4, targets3,
                                   num_classes=num_classes, epsilon=epsilon))
    ref4 = _reference(inputs4, targets3, num_classes, epsilon)
    assert jnp.allclose(loss4, ref4, atol=1e-3, rtol=1e-3), (loss4, ref4)

    print("KERNEL_OK")
</pallas_src>

<mosaic_0001>
module attributes {stable_mosaic.version = 11 : i64} {
  func.func @_ce_label_smooth_kernel(%arg0: i32, %arg1: memref<8x128xf32, #tpu.memory_space<vmem>>, %arg2: memref<8x1xi32, #tpu.memory_space<vmem>>, %arg3: memref<1x8x128xf32, #tpu.memory_space<vmem>>) attributes {dimension_semantics = [#tpu.dimension_semantics<parallel>], iteration_bounds = array<i64: 1>, scalar_prefetch = 0 : i64, scratch_operands = 0 : i64, tpu.core_type = #tpu.core_type<tc>, window_params = [{transform_indices = @transform_0, window_bounds = array<i64: 8, 128>}, {transform_indices = @transform_1, window_bounds = array<i64: 8, 1>}, {transform_indices = @transform_2, window_bounds = array<i64: 1, 8, 128>}]} {
    %c0 = arith.constant 0 : index
    %c0_0 = arith.constant 0 : index
    %0 = vector.load %arg1[%c0, %c0_0] : memref<8x128xf32, #tpu.memory_space<vmem>>, vector<8x128xf32>
    %1 = tpu.iota {dimensions = array<i32: 1>} : vector<8x128xi32>
    %c31_i32 = arith.constant 31 : i32
    %2 = vector.broadcast %c31_i32 : i32 to vector<8x128xi32>
    %3 = arith.cmpi slt, %1, %2 : vector<8x128xi32>
    %cst = arith.constant -1.000000e+30 : f32
    %4 = vector.broadcast %cst : f32 to vector<8x128xf32>
    %5 = arith.select %3, %0, %4 : vector<8x128xi1>, vector<8x128xf32>
    %cst_1 = arith.constant dense<0xFF800000> : vector<8xf32>
    %6 = vector.multi_reduction <maximumf>, %5, %cst_1 [1] : vector<8x128xf32> to vector<8xf32>
    %7 = vector.shape_cast %6 : vector<8xf32> to vector<8x1xf32>
    %8 = vector.broadcast %7 : vector<8x1xf32> to vector<8x128xf32>
    %9 = arith.subf %5, %8 : vector<8x128xf32>
    %10 = math.exp %9 : vector<8x128xf32>
    %cst_2 = arith.constant dense<0.000000e+00> : vector<8xf32>
    %11 = vector.multi_reduction <add>, %10, %cst_2 [1] : vector<8x128xf32> to vector<8xf32>
    %12 = vector.shape_cast %11 : vector<8xf32> to vector<8x1xf32>
    %13 = math.log %12 : vector<8x1xf32>
    %c0_3 = arith.constant 0 : index
    %c0_4 = arith.constant 0 : index
    %14 = vector.load %arg2[%c0_3, %c0_4] : memref<8x1xi32, #tpu.memory_space<vmem>>, vector<8x1xi32>
    %15 = vector.broadcast %14 : vector<8x1xi32> to vector<8x128xi32>
    %16 = arith.cmpi eq, %1, %15 : vector<8x128xi32>
    %cst_5 = arith.constant 0.000000e+00 : f32
    %17 = vector.broadcast %cst_5 : f32 to vector<8x128xf32>
    %18 = arith.select %16, %9, %17 : vector<8x128xi1>, vector<8x128xf32>
    %cst_6 = arith.constant dense<0.000000e+00> : vector<8xf32>
    %19 = vector.multi_reduction <add>, %18, %cst_6 [1] : vector<8x128xf32> to vector<8xf32>
    %20 = vector.shape_cast %19 : vector<8xf32> to vector<8x1xf32>
    %cst_7 = arith.constant 0.000000e+00 : f32
    %21 = vector.broadcast %cst_7 : f32 to vector<8x128xf32>
    %22 = arith.select %3, %9, %21 : vector<8x128xi1>, vector<8x128xf32>
    %cst_8 = arith.constant dense<0.000000e+00> : vector<8xf32>
    %23 = vector.multi_reduction <add>, %22, %cst_8 [1] : vector<8x128xf32> to vector<8xf32>
    %24 = vector.shape_cast %23 : vector<8xf32> to vector<8x1xf32>
    %cst_9 = arith.constant 0.899999976 : f32
    %25 = vector.broadcast %cst_9 : f32 to vector<8x1xf32>
    %26 = arith.mulf %25, %20 : vector<8x1xf32>
    %27 = arith.subf %13, %26 : vector<8x1xf32>
    %cst_10 = arith.constant 0.0032258064 : f32
    %28 = vector.broadcast %cst_10 : f32 to vector<8x1xf32>
    %29 = arith.mulf %28, %24 : vector<8x1xf32>
    %30 = arith.subf %27, %29 : vector<8x1xf32>
    %c8_i32 = arith.constant 8 : i32
    %31 = arith.muli %arg0, %c8_i32 : i32
    %32 = tpu.iota {dimensions = array<i32: 0>} : vector<8x1xi32>
    %33 = vector.broadcast %31 : i32 to vector<8x1xi32>
    %34 = arith.addi %33, %32 : vector<8x1xi32>
    %c8_i32_11 = arith.constant 8 : i32
    %35 = vector.broadcast %c8_i32_11 : i32 to vector<8x1xi32>
    %36 = arith.cmpi slt, %34, %35 : vector<8x1xi32>
    %cst_12 = arith.constant 0.000000e+00 : f32
    %37 = vector.broadcast %cst_12 : f32 to vector<8x1xf32>
    %38 = arith.select %36, %30, %37 : vector<8x1xi1>, vector<8x1xf32>
    %39 = vector.shape_cast %38 : vector<8x1xf32> to vector<1x8x1xf32>
    %cst_13 = arith.constant dense<0.000000e+00> : vector<1xf32>
    %40 = vector.multi_reduction <add>, %39, %cst_13 [1, 2] : vector<1x8x1xf32> to vector<1xf32>
    %41 = vector.shape_cast %40 : vector<1xf32> to vector<1x1x1xf32>
    %42 = vector.extract %41[0, 0, 0] : f32 from vector<1x1x1xf32>
    %43 = tpu.iota {dimensions = array<i32: 1>} : vector<1x8x128xi32>
    %44 = tpu.iota {dimensions = array<i32: 2>} : vector<1x8x128xi32>
    %c0_i32 = arith.constant 0 : i32
    %45 = vector.broadcast %c0_i32 : i32 to vector<1x8x128xi32>
    %46 = arith.cmpi eq, %43, %45 : vector<1x8x128xi32>
    %c0_i32_14 = arith.constant 0 : i32
    %47 = vector.broadcast %c0_i32_14 : i32 to vector<1x8x128xi32>
    %48 = arith.cmpi eq, %44, %47 : vector<1x8x128xi32>
    %49 = arith.andi %46, %48 : vector<1x8x128xi1>
    %cst_15 = arith.constant 0.000000e+00 : f32
    %50 = vector.broadcast %42 : f32 to vector<1x8x128xf32>
    %51 = vector.broadcast %cst_15 : f32 to vector<1x8x128xf32>
    %52 = arith.select %49, %50, %51 : vector<1x8x128xi1>, vector<1x8x128xf32>
    %c0_16 = arith.constant 0 : index
    %c0_17 = arith.constant 0 : index
    %c0_18 = arith.constant 0 : index
    %53 = vector.load %arg3[%c0_16, %c0_17, %c0_18] : memref<1x8x128xf32, #tpu.memory_space<vmem>>, vector<1x8x128xf32>
    tpu.vector_store %arg3[%c0_16, %c0_17, %c0_18], %52 {strides = array<i32>} : memref<1x8x128xf32, #tpu.memory_space<vmem>>, vector<1x8x128xf32>,
    return
  }
  func.func @transform_0(%arg0: i32) -> (i32, i32) {
    %c0_i32 = arith.constant 0 : i32
    %c0_i32_0 = arith.constant 0 : i32
    return %arg0, %c0_i32 : i32, i32
  }
  func.func @transform_1(%arg0: i32) -> (i32, i32) {
    %c0_i32 = arith.constant 0 : i32
    %c0_i32_0 = arith.constant 0 : i32
    return %arg0, %c0_i32 : i32, i32
  }
  func.func @transform_2(%arg0: i32) -> (i32, i32, i32) {
    %c0_i32 = arith.constant 0 : i32
    %c0_i32_0 = arith.constant 0 : i32
    %c0_i32_1 = arith.constant 0 : i32
    return %arg0, %c0_i32, %c0_i32_0 : i32, i32, i32
  }
}

</mosaic_0001>

<llo_original>
// kernel: tpu_custom_call.1
$region0: #{tpu_custom_call.1}
  #allocation0 [shape = 'u32[]', space=smem, size = 0x4, offset = 0x4, fixed_abs, tag = 'smem constant byte address 0x4 - core index']
  #allocation1 [shape = 'u32[144,128]{1,0:T(1,128)}', space=vmem, size = 0x12000, scoped, tag = 'internal scratch']
  %s0 = inlined_call_operand.vmem [shape: f32[8,128], index: 0, kind: input, shape index: {}]
  %s1 = inlined_call_operand.vmem [shape: s32[8,1], index: 1, kind: input, shape index: {}]
  %s2 = inlined_call_operand.hbm [shape: f32[1,8,128], index: 2, kind: output, shape index: {}]
  %s3 = sld [smem:[#allocation0]]
  $region18: #{tpu_custom_call.1} parent=0
    _
  %s5 = ssub.s32 1, %s3
  %s6 = scalar_select 0, %s5, %s3
  $region1: #{tpu_custom_call.1} parent=0
    #allocation2 [shape = 'u8[4096]{0}', space=vmem, size = 0x1000, scoped, tag = 'output window, operand 0, single buffered']
    #allocation3 [shape = 's32[1]{0}', space=sflag, size = 0x4, scoped, tag = 'scoped memory for tpu_custom_call.1']
    %7 = vsyncpa [#allocation3], 0
    // Predicated region
    $region2: #{tpu_custom_call.1} parent=1 // pred_check
      _
    $region3: #{tpu_custom_call.1} parent=1 // pred_check_branch
      %9 = sbr.rel (0) target = $region5
    $region4: #{tpu_custom_call.1} parent=1 // pred_region
      _
    $region5: #{tpu_custom_call.1} parent=1 // pred_fallthru
      _
    // Predicated region
    $region6: #{tpu_custom_call.1} parent=1 // pred_check
      _
    $region7: #{tpu_custom_call.1} parent=1 // pred_check_branch
      %11 = sbr.rel (0) target = $region9
    $region8: #{tpu_custom_call.1} parent=1 // pred_region
      _
    $region9: #{tpu_custom_call.1} parent=1 // pred_fallthru
      _
    %v12 = vld [vmem:[%s0] sm:$0xff]
    %v13 = vlaneseq
    %v14 = vand.u32 %v13, 127
    %vm15 = vcmp.lt.s32.totalorder %v14, 31
    %v16 = vsel %vm15, %v12, -1e+30
    %17 = vmax.xlane.f32.xlu0 %v16
    %v18 = vpop.xlane.xlu0 %17
    %v19 = vsub.f32 %v16, %v18
    %v20 = vmul.f32 %v19, 1.442695
    %v21 = vpow.pop %v20
    %22 = vadd.xlane.f32.xlu0 %v21
    %v23 = vpop.xlane.xlu0 %22
    %v24 = vlog2.pop %v23
    %v25 = vmul.f32 %v24, 0.6931472
    %v26 = vld [vmem:[%s1] sm:$0xff]
    %27 = vset.pattern.permute.xlu0 0
    %28 = vperm.xlu0 %27, %v26
    %v29 = vpop.permute.xlu0 %28
    %vm30 = vcmp.eq.s32.totalorder %v14, %v29
    %v31 = vsel %vm30, %v19, 0.0
    %32 = vadd.xlane.f32.xlu0 %v31
    %v33 = vpop.xlane.xlu0 %32
    %v34 = vsel %vm15, %v19, 0.0
    %35 = vadd.xlane.f32.xlu0 %v34
    %v36 = vpop.xlane.xlu0 %35
    %v37 = vmul.f32 %v33, 0.9
    %v38 = vsub.f32 %v25, %v37
    %v39 = vmul.f32 %v36, 0.0032258064
    %v40 = vsub.f32 %v38, %v39
    %s41 = smul.u32 0, 8
    %v42 = vlaneseq
    %v43 = vshrl.u32 %v42, 7
    %v44 = vstv %s41
    %v45 = vadd.s32 %v44, %v43
    %vm46 = vcmp.lt.s32.totalorder %v45, 8
    %v47 = vsel %vm46, %v40, 0.0
    %vm48 = vcmask 7168
    %v49 = vsel %vm48, %v47, 0.0
    %50 = vadd.xlane.f32.xlu0 %v49
    %v51 = vpop.xlane.xlu0 %50
    %v52 = vrot.slane %v51, 4
    %v53 = vadd.f32 %v51, %v52
    %v54 = vrot.slane %v53, 2
    %v55 = vadd.f32 %v53, %v54
    %v56 = vrot.slane %v55, 1
    %v57 = vadd.f32 %v55, %v56
    %s58 = vtos %v57
    %vm59 = vcmp.eq.s32.totalorder %v43, 0
    %vm60 = vcmp.eq.s32.totalorder %v14, 0
    %vm61 = vmand %vm59, %vm60
    %v62 = vstv %s58
    %v63 = vsel %vm61, %v62, 0.0
    %64 = vst [vmem:[#allocation2] sm:$0xff] %v63
    // Predicated region
    $region10: #{tpu_custom_call.1} parent=1 // pred_check
      _
    $region11: #{tpu_custom_call.1} parent=1 // pred_check_branch
      %66 = sbr.rel (0) target = $region13
    $region12: #{tpu_custom_call.1} parent=1 // pred_region
      %s68 = ssub.s32 128, 128
      %69 = vsyncadd [#allocation3], %s68
      %s71 = sshll.u32 [#allocation2], 4
      %s72 = int_to_ptr.vmem [resolvable:$true] %s71
      %74 = dma.vmem_to_hbm [thread:$0]  %s72, 128, %s2, [#allocation3]
    $region13: #{tpu_custom_call.1} parent=1 // pred_fallthru
      _
    // Predicated region
    $region14: #{tpu_custom_call.1} parent=1 // pred_check
      _
    $region15: #{tpu_custom_call.1} parent=1 // pred_check_branch
      %76 = sbr.rel (0) target = $region17
    $region16: #{tpu_custom_call.1} parent=1 // pred_region
      %77 = dma.done [#allocation3], 128
    $region17: #{tpu_custom_call.1} parent=1 // pred_fallthru
      _
    %78 = vsyncpa [#allocation3], 1

</llo_original>
